<compile_context>
chip_gen: v7x
topology: tpu7x:2x2x1
jax: 0.10.0
libtpu: 0.0.40
codegen_flags: <defaults>
</compile_context>

<pallas_src>
import functools

import jax
import jax.numpy as jnp
from jax import lax
from jax.experimental import pallas as pl
from jax.experimental.pallas import tpu as pltpu


def _vmem_capacity_bytes():
    try:
        info = pltpu.get_tpu_info()
        cap = getattr(info, "vmem_capacity_bytes", None)
        if cap:
            return int(cap)
    except Exception:
        pass
    return 64 << 20  # conservative fallback (v7x); v5e/v6e have 128 MiB


def _round_up(x, k):
    return -(-x // k) * k


def _choose_tiling(n, m, pair_itemsize, vmem_cap):
    """Pick an (N, M) block (bn, bm) and grid extents.

    Budget: double-buffered (x, y) input blocks ~ vmem_cap / 4, i.e. one
    (x, y) block pair ~ vmem_cap / 8.  Returns (bn, bm, grid_n, grid_m, mask).
    """
    elems = max((vmem_cap // 8) // pair_itemsize, 8 * 128)
    m_cols = _round_up(m, 128)  # lane-padded row width (VMEM layout / budget)

    if n * m_cols <= elems:
        # Whole problem fits in a single block.
        return n, m, 1, 1, False
    if 8 * m_cols <= elems:
        # Small M: batch many full samples per block (bn is a multiple of 8).
        bn = (elems // m_cols) // 8 * 8
        return bn, m, pl.cdiv(n, bn), 1, False
    # Large per-sample M: tile along M.  bn == n (< 8) or a multiple of 8.
    bn = n if n < 8 else 8
    bm = max(128, ((elems // bn) // 128) * 128)  # strictly < m in this branch
    return bn, bm, pl.cdiv(n, bn), pl.cdiv(m, bm), (m % bm != 0)


def _dice_sums_kernel(p_ref, t_ref, num_ref, den_ref, *, p_pow, m_total,
                      block_m, steps_per_split, mask_tail, upcast_x, upcast_y):
    s = pl.program_id(1)   # reduction-axis split (for v7x second TensorCore)
    j = pl.program_id(2)   # reduction step within the split

    x = p_ref[...]
    y = t_ref[...]
    if upcast_x:
        x = x.astype(jnp.float32)
    if upcast_y:
        y = y.astype(jnp.float32)

    if mask_tail:
        # Zero out-of-range columns of the (globally) last, partial M-block.
        start = (s * steps_per_split + j) * block_m
        col = lax.broadcasted_iota(jnp.int32, x.shape, 1) + start
        valid = col < m_total
        x = jnp.where(valid, x, 0.0)
        y = jnp.where(valid, y, 0.0)

    prod = x * y
    if p_pow == 2:
        pw = x * x + y * y
    elif float(p_pow) == int(p_pow) and int(p_pow) >= 1:
        # Integer p: repeated multiplies (avoid generic pow -> exp/log on EUP).
        xp, yp = x, y
        for _ in range(int(p_pow) - 1):
            xp = xp * x
            yp = yp * y
        pw = xp + yp
    else:
        pw = x ** p_pow + y ** p_pow

    num_part = jnp.sum(prod, axis=1, keepdims=True)   # (bn, 1)
    den_part = jnp.sum(pw, axis=1, keepdims=True)     # (bn, 1)

    # Output blocks are resident across the reduction axis; init is merged
    # into the first step (no zero-fill pass, no scratch accumulators).
    @pl.when(j == 0)
    def _init():
        num_ref[...] = jnp.broadcast_to(num_part, num_ref.shape)
        den_ref[...] = jnp.broadcast_to(den_part, den_ref.shape)

    @pl.when(j > 0)
    def _accum():
        num_ref[...] = num_ref[...] + num_part
        den_ref[...] = den_ref[...] + den_part


def _dice_sums(pred2, targ2, p_pow):
    """Per-sample sums: (sum(x*y), sum(x^p + y^p)) for (N, M) inputs."""
    n, m = pred2.shape
    isz = jnp.dtype(pred2.dtype).itemsize + jnp.dtype(targ2.dtype).itemsize
    vmem_cap = _vmem_capacity_bytes()
    bn, bm, grid_n, grid_m, mask_tail = _choose_tiling(n, m, isz, vmem_cap)

    # If the batch axis can't be sharded across cores (grid_n == 1), split the
    # reduction axis into two "parallel" halves so a second TensorCore (v7x)
    # gets work; the two partials are summed in the wrapper.
    n_splits = 2 if (grid_n == 1 and grid_m >= 2 and grid_m % 2 == 0) else 1
    steps_per_split = grid_m // n_splits
    grid = (grid_n, n_splits, steps_per_split)

    kernel = functools.partial(
        _dice_sums_kernel, p_pow=p_pow, m_total=m, block_m=bm,
        steps_per_split=steps_per_split, mask_tail=mask_tail,
        upcast_x=pred2.dtype != jnp.float32,
        upcast_y=targ2.dtype != jnp.float32)

    # Explicit VMEM budget: double-buffered input blocks + tiny resident
    # outputs + margin for compiler scratch, capped below physical VMEM.
    bn_pad, bm_pad = _round_up(bn, 8), _round_up(bm, 128)
    in_bytes = 2 * bn_pad * bm_pad * isz          # 2 pipeline buffers, x + y
    out_bytes = 2 * 2 * bn_pad * 128 * 4          # 2 outputs, double-buffered
    vmem_limit = max(in_bytes + out_bytes + (16 << 20), 32 << 20)
    vmem_limit = min(vmem_limit, vmem_cap - (16 << 20))

    in_map = lambda i, s, j: (i, s * steps_per_split + j)
    out_map = lambda i, s, j: (s, i, 0)

    num, den = pl.pallas_call(
        kernel,
        out_shape=(
            jax.ShapeDtypeStruct((n_splits, n, 128), jnp.float32),
            jax.ShapeDtypeStruct((n_splits, n, 128), jnp.float32),
        ),
        grid=grid,
        in_specs=[
            pl.BlockSpec((bn, bm), in_map),
            pl.BlockSpec((bn, bm), in_map),
        ],
        out_specs=(
            pl.BlockSpec((None, bn, 128), out_map),
            pl.BlockSpec((None, bn, 128), out_map),
        ),
        compiler_params=pltpu.CompilerParams(
            dimension_semantics=("parallel", "parallel", "arbitrary"),
            vmem_limit_bytes=int(vmem_limit),
        ),
    )(pred2, targ2)

    # Combine split partials; every lane of the 128-wide output holds the sum.
    return num[..., 0].sum(axis=0), den[..., 0].sum(axis=0)


def binary_dice_loss(predict, target, smooth=1.0, p=2, reduction="mean",
                     ohem_ratio=None):
    """Pallas implementation of BinaryDiceLoss.forward (ohem_ratio=None path)."""
    assert predict.shape[0] == target.shape[0], \
        "predict & target batch size don't match"
    if ohem_ratio:
        # TODO(synk): ohem_ratio path needs a global torch.topk over N*M elements
        # (selection/sort) with no clean Pallas TPU equivalent; not implemented.
        raise NotImplementedError("ohem_ratio is not supported")

    n = predict.shape[0]
    pred2 = predict.reshape(n, -1)
    targ2 = target.reshape(n, -1)

    num_s, den_s = _dice_sums(pred2, targ2, p)
    num = num_s + smooth
    den = den_s + smooth
    loss = 1.0 - num / den

    if reduction == "mean":
        return jnp.mean(loss)
    elif reduction == "sum":
        return jnp.sum(loss)
    elif reduction == "none":
        return loss
    else:
        raise Exception("Unexpected reduction {}".format(reduction))


def _reference_dice(predict, target, smooth=1.0, p=2, reduction="mean"):
    n = predict.shape[0]
    pr = predict.reshape(n, -1).astype(jnp.float32)
    tg = target.reshape(n, -1).astype(jnp.float32)
    num = jnp.sum(pr * tg, axis=1) + smooth
    den = jnp.sum(pr ** p + tg ** p, axis=1) + smooth
    loss = 1.0 - num / den
    if reduction == "mean":
        return jnp.mean(loss)
    if reduction == "sum":
        return jnp.sum(loss)
    return loss


if __name__ == "__main__":
    key = jax.random.PRNGKey(0)
    k1, k2, k3, k4 = jax.random.split(key, 4)

    # Case 1: default config, f32/f32, [N, C, H, W] = [2, 4, 16, 16] (M = 1024).
    predict = jax.nn.sigmoid(
        jax.random.normal(k1, (2, 4, 16, 16), dtype=jnp.float32))
    target = (jax.random.uniform(k2, (2, 4, 16, 16)) > 0.5).astype(jnp.float32)
    loss = jax.block_until_ready(
        binary_dice_loss(predict, target, smooth=1.0, p=2, reduction="mean"))
    ref = _reference_dice(predict, target, smooth=1.0, p=2, reduction="mean")
    assert jnp.allclose(loss, ref, rtol=1e-5, atol=1e-6), (loss, ref)

    # Case 2: ragged M (not a multiple of 128) and lower-precision target,
    # reduction='none'.
    predict2 = jax.nn.sigmoid(
        jax.random.normal(k3, (3, 5, 9, 7), dtype=jnp.float32))
    target2 = (jax.random.uniform(k4, (3, 5, 9, 7)) > 0.5).astype(jnp.bfloat16)
    loss2 = jax.block_until_ready(
        binary_dice_loss(predict2, target2, smooth=1.0, p=2, reduction="none"))
    ref2 = _reference_dice(predict2, target2, smooth=1.0, p=2, reduction="none")
    assert jnp.allclose(loss2, ref2, rtol=1e-5, atol=1e-5), (loss2, ref2)

    print("KERNEL_OK")
</pallas_src>

<mosaic_0001>
module attributes {stable_mosaic.version = 11 : i64} {
  func.func @_dice_sums_kernel(%arg0: i32, %arg1: i32, %arg2: i32, %arg3: memref<2x1024xf32, #tpu.memory_space<vmem>>, %arg4: memref<2x1024xf32, #tpu.memory_space<vmem>>, %arg5: memref<1x2x128xf32, #tpu.memory_space<vmem>>, %arg6: memref<1x2x128xf32, #tpu.memory_space<vmem>>) attributes {dimension_semantics = [#tpu.dimension_semantics<parallel>, #tpu.dimension_semantics<parallel>, #tpu.dimension_semantics<arbitrary>], iteration_bounds = array<i64: 1, 1, 1>, scalar_prefetch = 0 : i64, scratch_operands = 0 : i64, tpu.core_type = #tpu.core_type<tc>, window_params = [{transform_indices = @transform_0, window_bounds = array<i64: 2, 1024>}, {transform_indices = @transform_1, window_bounds = array<i64: 2, 1024>}, {transform_indices = @transform_2, window_bounds = array<i64: 1, 2, 128>}, {transform_indices = @transform_3, window_bounds = array<i64: 1, 2, 128>}]} {
    %c0 = arith.constant 0 : index
    %c0_0 = arith.constant 0 : index
    %0 = vector.load %arg3[%c0, %c0_0] : memref<2x1024xf32, #tpu.memory_space<vmem>>, vector<2x1024xf32>
    %c0_1 = arith.constant 0 : index
    %c0_2 = arith.constant 0 : index
    %1 = vector.load %arg4[%c0_1, %c0_2] : memref<2x1024xf32, #tpu.memory_space<vmem>>, vector<2x1024xf32>
    %2 = arith.mulf %0, %1 : vector<2x1024xf32>
    %3 = arith.mulf %0, %0 : vector<2x1024xf32>
    %4 = arith.mulf %1, %1 : vector<2x1024xf32>
    %5 = arith.addf %3, %4 : vector<2x1024xf32>
    %cst = arith.constant dense<0.000000e+00> : vector<2xf32>
    %6 = vector.multi_reduction <add>, %2, %cst [1] : vector<2x1024xf32> to vector<2xf32>
    %7 = vector.shape_cast %6 : vector<2xf32> to vector<2x1xf32>
    %cst_3 = arith.constant dense<0.000000e+00> : vector<2xf32>
    %8 = vector.multi_reduction <add>, %5, %cst_3 [1] : vector<2x1024xf32> to vector<2xf32>
    %9 = vector.shape_cast %8 : vector<2xf32> to vector<2x1xf32>
    %c0_i32 = arith.constant 0 : i32
    %10 = arith.cmpi eq, %arg2, %c0_i32 : i32
    %11 = arith.extui %10 : i1 to i32
    %c0_i32_4 = arith.constant 0 : i32
    %12 = arith.cmpi ne, %11, %c0_i32_4 : i32
    scf.if %12 {
      %16 = vector.shape_cast %7 : vector<2x1xf32> to vector<2x1xf32>
      %17 = vector.broadcast %16 : vector<2x1xf32> to vector<2x128xf32>
      %c0_7 = arith.constant 0 : index
      %c0_8 = arith.constant 0 : index
      %c0_9 = arith.constant 0 : index
      %18 = vector.load %arg5[%c0_7, %c0_8, %c0_9] : memref<1x2x128xf32, #tpu.memory_space<vmem>>, vector<1x2x128xf32>
      %19 = vector.shape_cast %18 : vector<1x2x128xf32> to vector<2x128xf32>
      %20 = vector.shape_cast %17 : vector<2x128xf32> to vector<1x2x128xf32>
      tpu.vector_store %arg5[%c0_7, %c0_8, %c0_9], %20 {strides = array<i32>} : memref<1x2x128xf32, #tpu.memory_space<vmem>>, vector<1x2x128xf32>,
      %21 = vector.shape_cast %9 : vector<2x1xf32> to vector<2x1xf32>
      %22 = vector.broadcast %21 : vector<2x1xf32> to vector<2x128xf32>
      %c0_10 = arith.constant 0 : index
      %c0_11 = arith.constant 0 : index
      %c0_12 = arith.constant 0 : index
      %23 = vector.load %arg6[%c0_10, %c0_11, %c0_12] : memref<1x2x128xf32, #tpu.memory_space<vmem>>, vector<1x2x128xf32>
      %24 = vector.shape_cast %23 : vector<1x2x128xf32> to vector<2x128xf32>
      %25 = vector.shape_cast %22 : vector<2x128xf32> to vector<1x2x128xf32>
      tpu.vector_store %arg6[%c0_10, %c0_11, %c0_12], %25 {strides = array<i32>} : memref<1x2x128xf32, #tpu.memory_space<vmem>>, vector<1x2x128xf32>,
    } else {
    }
    %c0_i32_5 = arith.constant 0 : i32
    %13 = arith.cmpi sgt, %arg2, %c0_i32_5 : i32
    %14 = arith.extui %13 : i1 to i32
    %c0_i32_6 = arith.constant 0 : i32
    %15 = arith.cmpi ne, %14, %c0_i32_6 : i32
    scf.if %15 {
      %c0_7 = arith.constant 0 : index
      %c0_8 = arith.constant 0 : index
      %c0_9 = arith.constant 0 : index
      %16 = vector.load %arg5[%c0_7, %c0_8, %c0_9] : memref<1x2x128xf32, #tpu.memory_space<vmem>>, vector<1x2x128xf32>
      %17 = vector.shape_cast %16 : vector<1x2x128xf32> to vector<2x128xf32>
      %18 = vector.broadcast %7 : vector<2x1xf32> to vector<2x128xf32>
      %19 = arith.addf %17, %18 : vector<2x128xf32>
      %c0_10 = arith.constant 0 : index
      %c0_11 = arith.constant 0 : index
      %c0_12 = arith.constant 0 : index
      %20 = vector.load %arg5[%c0_10, %c0_11, %c0_12] : memref<1x2x128xf32, #tpu.memory_space<vmem>>, vector<1x2x128xf32>
      %21 = vector.shape_cast %20 : vector<1x2x128xf32> to vector<2x128xf32>
      %22 = vector.shape_cast %19 : vector<2x128xf32> to vector<1x2x128xf32>
      tpu.vector_store %arg5[%c0_10, %c0_11, %c0_12], %22 {strides = array<i32>} : memref<1x2x128xf32, #tpu.memory_space<vmem>>, vector<1x2x128xf32>,
      %c0_13 = arith.constant 0 : index
      %c0_14 = arith.constant 0 : index
      %c0_15 = arith.constant 0 : index
      %23 = vector.load %arg6[%c0_13, %c0_14, %c0_15] : memref<1x2x128xf32, #tpu.memory_space<vmem>>, vector<1x2x128xf32>
      %24 = vector.shape_cast %23 : vector<1x2x128xf32> to vector<2x128xf32>
      %25 = vector.broadcast %9 : vector<2x1xf32> to vector<2x128xf32>
      %26 = arith.addf %24, %25 : vector<2x128xf32>
      %c0_16 = arith.constant 0 : index
      %c0_17 = arith.constant 0 : index
      %c0_18 = arith.constant 0 : index
      %27 = vector.load %arg6[%c0_16, %c0_17, %c0_18] : memref<1x2x128xf32, #tpu.memory_space<vmem>>, vector<1x2x128xf32>
      %28 = vector.shape_cast %27 : vector<1x2x128xf32> to vector<2x128xf32>
      %29 = vector.shape_cast %26 : vector<2x128xf32> to vector<1x2x128xf32>
      tpu.vector_store %arg6[%c0_16, %c0_17, %c0_18], %29 {strides = array<i32>} : memref<1x2x128xf32, #tpu.memory_space<vmem>>, vector<1x2x128xf32>,
    } else {
    }
    return
  }
  func.func @transform_0(%arg0: i32, %arg1: i32, %arg2: i32) -> (i32, i32) {
    %c1_i32 = arith.constant 1 : i32
    %0 = arith.muli %arg1, %c1_i32 : i32
    %1 = arith.addi %0, %arg2 : i32
    %c0_i32 = arith.constant 0 : i32
    return %arg0, %1 : i32, i32
  }
  func.func @transform_1(%arg0: i32, %arg1: i32, %arg2: i32) -> (i32, i32) {
    %c1_i32 = arith.constant 1 : i32
    %0 = arith.muli %arg1, %c1_i32 : i32
    %1 = arith.addi %0, %arg2 : i32
    %c0_i32 = arith.constant 0 : i32
    return %arg0, %1 : i32, i32
  }
  func.func @transform_2(%arg0: i32, %arg1: i32, %arg2: i32) -> (i32, i32, i32) {
    %c0_i32 = arith.constant 0 : i32
    %c0_i32_0 = arith.constant 0 : i32
    return %arg1, %arg0, %c0_i32 : i32, i32, i32
  }
  func.func @transform_3(%arg0: i32, %arg1: i32, %arg2: i32) -> (i32, i32, i32) {
    %c0_i32 = arith.constant 0 : i32
    %c0_i32_0 = arith.constant 0 : i32
    return %arg1, %arg0, %c0_i32 : i32, i32, i32
  }
}

</mosaic_0001>

<llo_original>
// kernel: tpu_custom_call.1
$region0: #{tpu_custom_call.1}
  #allocation0 [shape = 'u32[]', space=smem, size = 0x4, offset = 0x4, fixed_abs, tag = 'smem constant byte address 0x4 - core index']
  #allocation1 [shape = 'u32[144,128]{1,0:T(1,128)}', space=vmem, size = 0x12000, scoped, tag = 'internal scratch']
  %s0 = inlined_call_operand.hbm [shape: f32[2,1024], index: 0, kind: input, shape index: {}]
  %s1 = inlined_call_operand.hbm [shape: f32[2,1024], index: 1, kind: input, shape index: {}]
  %s2 = inlined_call_operand.hbm [shape: f32[1,2,128], index: 2, kind: output, shape index: {0}]
  %s3 = inlined_call_operand.hbm [shape: f32[1,2,128], index: 3, kind: output, shape index: {1}]
  %4 = xla_tuple %s2, %s3
  %s5 = sld [smem:[#allocation0]]
  $region42: #{tpu_custom_call.1} parent=0
    _
  %s7 = ssub.s32 1, %s5
  %s8 = scalar_select 0, %s7, %s5
  $region1: #{tpu_custom_call.1} parent=0
    #allocation2 [shape = 'u8[8192]{0}', space=vmem, size = 0x2000, scoped, tag = 'input window, operand 0, single buffered']
    #allocation3 [shape = 's32[1]{0}', space=sflag, size = 0x4, scoped, tag = 'scoped memory for tpu_custom_call.1']
    #allocation4 [shape = 's32[1]{0}', space=sflag, size = 0x4, scoped, tag = 'scoped memory for tpu_custom_call.1']
    #allocation5 [shape = 'u8[8192]{0}', space=vmem, size = 0x2000, scoped, tag = 'input window, operand 1, single buffered']
    #allocation6 [shape = 's32[1]{0}', space=sflag, size = 0x4, scoped, tag = 'scoped memory for tpu_custom_call.1']
    #allocation7 [shape = 'u8[1024]{0}', space=vmem, size = 0x400, scoped, tag = 'output window, operand 0, single buffered']
    #allocation8 [shape = 'u8[1024]{0}', space=vmem, size = 0x400, scoped, tag = 'output window, operand 1, single buffered']
    #allocation9 [shape = 's32[1]{0}', space=sflag, size = 0x4, scoped, tag = 'scoped memory for tpu_custom_call.1']
    %9 = vsyncpa [#allocation3], 0
    %10 = vsyncpa [#allocation6], 0
    %11 = vsyncpa [#allocation4], 0
    %12 = vsyncpa [#allocation9], 0
    // Predicated region
    $region2: #{tpu_custom_call.1} parent=1 // pred_check
      _
    $region3: #{tpu_custom_call.1} parent=1 // pred_check_branch
      %14 = sbr.rel (0) target = $region5
    $region4: #{tpu_custom_call.1} parent=1 // pred_region
      %s15 = sadd.s32 0, 0
      %s16 = smul.u32 8, %s15
      %s18 = ssub.s32 256, 256
      %19 = vsyncadd [#allocation3], %s18
      %s20 = smul.addr %s16, 32
      %s21 = scalar_lea.hbm %s0, %s20
      %s23 = sshll.u32 [#allocation2], 4
      %s24 = int_to_ptr.vmem [resolvable:$true] %s23
      %26 = dma.hbm_to_vmem [thread:$0]  %s21, 256, %s24, [#allocation3]
    $region5: #{tpu_custom_call.1} parent=1 // pred_fallthru
      _
    // Predicated region
    $region6: #{tpu_custom_call.1} parent=1 // pred_check
      _
    $region7: #{tpu_custom_call.1} parent=1 // pred_check_branch
      %28 = sbr.rel (0) target = $region9
    $region8: #{tpu_custom_call.1} parent=1 // pred_region
      %s29 = sadd.s32 0, 0
      %s30 = smul.u32 8, %s29
      %s32 = ssub.s32 256, 256
      %33 = vsyncadd [#allocation6], %s32
      %s34 = smul.addr %s30, 32
      %s35 = scalar_lea.hbm %s1, %s34
      %s37 = sshll.u32 [#allocation5], 4
      %s38 = int_to_ptr.vmem [resolvable:$true] %s37
      %40 = dma.hbm_to_vmem [thread:$0]  %s35, 256, %s38, [#allocation6]
    $region9: #{tpu_custom_call.1} parent=1 // pred_fallthru
      _
    // Predicated region
    $region10: #{tpu_custom_call.1} parent=1 // pred_check
      _
    $region11: #{tpu_custom_call.1} parent=1 // pred_check_branch
      %42 = sbr.rel (0) target = $region13
    $region12: #{tpu_custom_call.1} parent=1 // pred_region
      %43 = dma.done [#allocation3], 256
    $region13: #{tpu_custom_call.1} parent=1 // pred_fallthru
      _
    // Predicated region
    $region14: #{tpu_custom_call.1} parent=1 // pred_check
      _
    $region15: #{tpu_custom_call.1} parent=1 // pred_check_branch
      %45 = sbr.rel (0) target = $region17
    $region16: #{tpu_custom_call.1} parent=1 // pred_region
      %46 = dma.done [#allocation6], 256
    $region17: #{tpu_custom_call.1} parent=1 // pred_fallthru
      _
    %s47 = sadd.s32 0, 0
    %s48 = smul.u32 8, %s47
    %s49 = sadd.s32 0, 0
    %s50 = smul.u32 8, %s49
    %v51 = vld [vmem:[#allocation2] sm:$0xff]
    %v52 = vld [vmem:[#allocation2 + $0x8] sm:$0xff]
    %v53 = vld [vmem:[#allocation5] sm:$0xff]
    %v54 = vld [vmem:[#allocation5 + $0x8] sm:$0xff]
    %v55 = vmul.f32 %v51, %v53
    %v56 = vmul.f32 %v52, %v54
    %v57 = vmul.f32 %v51, %v51
    %v58 = vmul.f32 %v52, %v52
    %v59 = vmul.f32 %v53, %v53
    %v60 = vmul.f32 %v54, %v54
    %v61 = vadd.f32 %v57, %v59
    %v62 = vadd.f32 %v58, %v60
    %v65 = vcombine.high %v55, %v55
    %v67 = vunpack.c.l.s4 1983009808
    %v68 = vunpack.c.0.s8 %v67
    %v69 = vlaneseq
    %v70 = vshrl.u32 %v69, 7
    %v71 = vsub.s32 %v68, %v70
    %v72 = vrot.slane %v55, %v71
    %v74 = vunpack.c.l.s4 1983009808
    %v75 = vunpack.c.0.s8 %v74
    %v76 = vlaneseq
    %v77 = vshrl.u32 %v76, 7
    %v78 = vsub.s32 %v75, %v77
    %v79 = vrot.slane %v65, %v78
    %v80 = vcombine.high %v72, %v72
    %v81 = vcombine.high %v79, %v79
    %v82 = vcombine.high %v56, %v56
    %v84 = vunpack.c.l.s4 1983009808
    %v85 = vunpack.c.0.s8 %v84
    %v86 = vlaneseq
    %v87 = vshrl.u32 %v86, 7
    %v88 = vsub.s32 %v85, %v87
    %v89 = vrot.slane %v56, %v88
    %v91 = vunpack.c.l.s4 1983009808
    %v92 = vunpack.c.0.s8 %v91
    %v93 = vlaneseq
    %v94 = vshrl.u32 %v93, 7
    %v95 = vsub.s32 %v92, %v94
    %v96 = vrot.slane %v82, %v95
    %v97 = vcombine.high %v89, %v89
    %v98 = vcombine.high %v96, %v96
    %vm107 = vcmask 1041408
    %v108 = vsel %vm107, %v72, 0.0
    %v109 = vsel %vm107, %v80, 0.0
    %v110 = vadd.f32 %v108, %v109
    %v111 = vsel %vm107, %v79, 0.0
    %v112 = vadd.f32 %v110, %v111
    %v113 = vsel %vm107, %v81, 0.0
    %v114 = vadd.f32 %v112, %v113
    %v115 = vsel %vm107, %v89, 0.0
    %v116 = vadd.f32 %v114, %v115
    %v117 = vsel %vm107, %v97, 0.0
    %v118 = vadd.f32 %v116, %v117
    %v119 = vsel %vm107, %v96, 0.0
    %v120 = vadd.f32 %v118, %v119
    %v121 = vsel %vm107, %v98, 0.0
    %v122 = vadd.f32 %v120, %v121
    %123 = vadd.xlane.f32.xlu0 %v122
    %v124 = vpop.xlane.xlu0 %123
    %v127 = vcombine.high %v61, %v61
    %v129 = vunpack.c.l.s4 1983009808
    %v130 = vunpack.c.0.s8 %v129
    %v131 = vlaneseq
    %v132 = vshrl.u32 %v131, 7
    %v133 = vsub.s32 %v130, %v132
    %v134 = vrot.slane %v61, %v133
    %v136 = vunpack.c.l.s4 1983009808
    %v137 = vunpack.c.0.s8 %v136
    %v138 = vlaneseq
    %v139 = vshrl.u32 %v138, 7
    %v140 = vsub.s32 %v137, %v139
    %v141 = vrot.slane %v127, %v140
    %v142 = vcombine.high %v134, %v134
    %v143 = vcombine.high %v141, %v141
    %v144 = vcombine.high %v62, %v62
    %v146 = vunpack.c.l.s4 1983009808
    %v147 = vunpack.c.0.s8 %v146
    %v148 = vlaneseq
    %v149 = vshrl.u32 %v148, 7
    %v150 = vsub.s32 %v147, %v149
    %v151 = vrot.slane %v62, %v150
    %v153 = vunpack.c.l.s4 1983009808
    %v154 = vunpack.c.0.s8 %v153
    %v155 = vlaneseq
    %v156 = vshrl.u32 %v155, 7
    %v157 = vsub.s32 %v154, %v156
    %v158 = vrot.slane %v144, %v157
    %v159 = vcombine.high %v151, %v151
    %v160 = vcombine.high %v158, %v158
    %v169 = vsel %vm107, %v134, 0.0
    %v170 = vsel %vm107, %v142, 0.0
    %v171 = vadd.f32 %v169, %v170
    %v172 = vsel %vm107, %v141, 0.0
    %v173 = vadd.f32 %v171, %v172
    %v174 = vsel %vm107, %v143, 0.0
    %v175 = vadd.f32 %v173, %v174
    %v176 = vsel %vm107, %v151, 0.0
    %v177 = vadd.f32 %v175, %v176
    %v178 = vsel %vm107, %v159, 0.0
    %v179 = vadd.f32 %v177, %v178
    %v180 = vsel %vm107, %v158, 0.0
    %v181 = vadd.f32 %v179, %v180
    %v182 = vsel %vm107, %v160, 0.0
    %v183 = vadd.f32 %v181, %v182
    %184 = vadd.xlane.f32.xlu0 %v183
    %v185 = vpop.xlane.xlu0 %184
    %p186 = scmp.eq.s32.totalorder 0, 0
    // Predicated region
    $region18: #{tpu_custom_call.1} parent=1 // pred_check
      %p187 = pneg %p186
    $region19: #{tpu_custom_call.1} parent=1 // pred_check_branch
      %189 = sbr.rel (%p187) target = $region21
    $region20: #{tpu_custom_call.1} parent=1 // pred_region
      %190 = vst [vmem:[#allocation7] sm:$0x3] %v124
      %191 = vst [vmem:[#allocation8] sm:$0x3] %v185
    $region21: #{tpu_custom_call.1} parent=1 // pred_fallthru
      _
    %p192 = scmp.gt.s32.totalorder 0, 0
    // Predicated region
    $region22: #{tpu_custom_call.1} parent=1 // pred_check
      %p193 = pneg %p192
    $region23: #{tpu_custom_call.1} parent=1 // pred_check_branch
      %195 = sbr.rel (%p193) target = $region25
    $region24: #{tpu_custom_call.1} parent=1 // pred_region
      %v196 = vld [vmem:[#allocation7] sm:$0x3]
      %v197 = vadd.f32 %v196, %v124
      %198 = vst [vmem:[#allocation7] sm:$0x3] %v197
      %v199 = vld [vmem:[#allocation8] sm:$0x3]
      %v200 = vadd.f32 %v199, %v185
      %201 = vst [vmem:[#allocation8] sm:$0x3] %v200
    $region25: #{tpu_custom_call.1} parent=1 // pred_fallthru
      _
    // Predicated region
    $region26: #{tpu_custom_call.1} parent=1 // pred_check
      _
    $region27: #{tpu_custom_call.1} parent=1 // pred_check_branch
      %203 = sbr.rel (0) target = $region29
    $region28: #{tpu_custom_call.1} parent=1 // pred_region
      %s205 = ssub.s32 32, 32
      %206 = vsyncadd [#allocation4], %s205
      %s208 = sshll.u32 [#allocation7], 4
      %s209 = int_to_ptr.vmem [resolvable:$true] %s208
      %211 = dma.vmem_to_hbm [thread:$0]  %s209, 32, %s2, [#allocation4]
    $region29: #{tpu_custom_call.1} parent=1 // pred_fallthru
      _
    // Predicated region
    $region30: #{tpu_custom_call.1} parent=1 // pred_check
      _
    $region31: #{tpu_custom_call.1} parent=1 // pred_check_branch
      %213 = sbr.rel (0) target = $region33
    $region32: #{tpu_custom_call.1} parent=1 // pred_region
      %s215 = ssub.s32 32, 32
      %216 = vsyncadd [#allocation9], %s215
      %s218 = sshll.u32 [#allocation8], 4
      %s219 = int_to_ptr.vmem [resolvable:$true] %s218
      %221 = dma.vmem_to_hbm [thread:$0]  %s219, 32, %s3, [#allocation9]
    $region33: #{tpu_custom_call.1} parent=1 // pred_fallthru
      _
    // Predicated region
    $region34: #{tpu_custom_call.1} parent=1 // pred_check
      _
    $region35: #{tpu_custom_call.1} parent=1 // pred_check_branch
      %223 = sbr.rel (0) target = $region37
    $region36: #{tpu_custom_call.1} parent=1 // pred_region
      %224 = dma.done [#allocation4], 32
    $region37: #{tpu_custom_call.1} parent=1 // pred_fallthru
      _
    // Predicated region
    $region38: #{tpu_custom_call.1} parent=1 // pred_check
      _
    $region39: #{tpu_custom_call.1} parent=1 // pred_check_branch
      %226 = sbr.rel (0) target = $region41
    $region40: #{tpu_custom_call.1} parent=1 // pred_region
      %227 = dma.done [#allocation9], 32
    $region41: #{tpu_custom_call.1} parent=1 // pred_fallthru
      _
    %228 = vsyncpa [#allocation3], 1
    %229 = vsyncpa [#allocation6], 1
    %230 = vsyncpa [#allocation4], 1
    %231 = vsyncpa [#allocation9], 1

</llo_original>
